<compile_context>
chip_gen: v6e
topology: v6e:2x2x1
jax: 0.10.0
libtpu: 0.0.40
codegen_flags: <defaults>
</compile_context>

<pallas_src>
import jax
import jax.numpy as jnp
from jax.experimental import pallas as pl
from jax.experimental.pallas import tpu as pltpu

C_IN = 3
C_OUT = 3
K = 3                      # 3x3 kernel, stride 1, padding 1
KK = C_IN * K * K          # 27 im2col taps
KK_PAD = 32                # pad taps to a multiple of 8 sublanes


def _conv3x3_matmul_kernel(w_ref, b_ref, slab_ref, o_ref):
    # w_ref:    (C_OUT, KK_PAD)    f32 VMEM weight tile
    # b_ref:    (C_OUT, 1)         f32 VMEM bias column
    # slab_ref: (KK_PAD, N*H*W)    f32 VMEM im2col slab (lane-dense columns)
    # o_ref:    (C_OUT, N*H*W)
    o_ref[...] = (
        jnp.dot(w_ref[...], slab_ref[...], preferred_element_type=jnp.float32)
        + b_ref[...]
    )


def interpolate_example_forward(x, weight, bias):
    """x: (N, T, C_IN, H, W) f32; weight: (C_OUT, C_IN, 3, 3); bias: (C_OUT,)."""
    frame = x[:, 0]                                    # (N, C_IN, H, W)
    N, C, H, W = frame.shape
    assert C == C_IN
    HW = H * W
    L = N * HW                                         # lane-dense column count

    # im2col in the wrapper (fine at these tiny sizes; see TODO above for
    # real video resolutions where the 9x HBM amplification would matter).
    fp = jnp.pad(frame, ((0, 0), (0, 0), (1, 1), (1, 1)))
    shifts = [fp[:, :, kh:kh + H, kw:kw + W]
              for kh in range(K) for kw in range(K)]   # each (N, C_IN, H, W)
    slab = jnp.stack(shifts, axis=2)                   # (N, C_IN, 9, H, W)
    # rows = ci*9 + kh*3 + kw (matches OIHW weight flattening),
    # cols = n*H*W + h*W + w (batch folded into lanes)
    slab = slab.transpose(1, 2, 0, 3, 4).reshape(KK, L)
    slab = jnp.pad(slab, ((0, KK_PAD - KK), (0, 0))).astype(jnp.float32)

    w2d = jnp.pad(weight.reshape(C_OUT, KK).astype(jnp.float32),
                  ((0, 0), (0, KK_PAD - KK)))          # (C_OUT, 32)
    b2d = bias.astype(jnp.float32).reshape(C_OUT, 1)   # (C_OUT, 1)

    out_flat = pl.pallas_call(
        _conv3x3_matmul_kernel,
        out_shape=jax.ShapeDtypeStruct((C_OUT, L), jnp.float32),
        in_specs=[
            pl.BlockSpec(memory_space=pltpu.MemorySpace.VMEM),  # weights
            pl.BlockSpec(memory_space=pltpu.MemorySpace.VMEM),  # bias
            pl.BlockSpec(memory_space=pltpu.MemorySpace.VMEM),  # slab
        ],
        out_specs=pl.BlockSpec(memory_space=pltpu.MemorySpace.VMEM),
    )(w2d, b2d, slab)

    # (C_OUT, N*HW) -> (N, C_OUT, H, W)
    return out_flat.reshape(C_OUT, N, H, W).transpose(1, 0, 2, 3)


def _reference_forward(x, weight, bias):
    frame = x[:, 0]
    out = jax.lax.conv_general_dilated(
        frame, weight, window_strides=(1, 1), padding=((1, 1), (1, 1)),
        dimension_numbers=("NCHW", "OIHW", "NCHW"))
    return out + bias[None, :, None, None]


if __name__ == "__main__":
    key = jax.random.PRNGKey(0)
    k_x, k_w, k_b = jax.random.split(key, 3)

    N, T, H, W = 2, 2, 16, 16
    x = jax.random.normal(k_x, (N, T, C_IN, H, W), dtype=jnp.float32)
    # deterministic synthetic Conv2d(3, 3, 3, 1, 1) parameters
    weight = jax.random.normal(k_w, (C_OUT, C_IN, K, K), dtype=jnp.float32) * 0.1
    bias = jax.random.normal(k_b, (C_OUT,), dtype=jnp.float32) * 0.1

    out = interpolate_example_forward(x, weight, bias)
    out = jax.block_until_ready(out)

    ref = jax.block_until_ready(_reference_forward(x, weight, bias))
    assert out.shape == (N, C_OUT, H, W)
    assert jnp.allclose(out, ref, atol=1e-5, rtol=1e-5), "mismatch vs reference conv"

    print("KERNEL_OK")
</pallas_src>

<mosaic_0001>
module attributes {stable_mosaic.version = 11 : i64} {
  func.func @_conv3x3_matmul_kernel(%arg0: memref<3x32xf32, #tpu.memory_space<vmem>>, %arg1: memref<3x1xf32, #tpu.memory_space<vmem>>, %arg2: memref<32x512xf32, #tpu.memory_space<vmem>>, %arg3: memref<3x512xf32, #tpu.memory_space<vmem>>) attributes {dimension_semantics = [], scalar_prefetch = 0 : i64, scratch_operands = 0 : i64, tpu.core_type = #tpu.core_type<tc>} {
    %c0 = arith.constant 0 : index
    %c0_0 = arith.constant 0 : index
    %0 = vector.load %arg0[%c0, %c0_0] : memref<3x32xf32, #tpu.memory_space<vmem>>, vector<3x32xf32>
    %c0_1 = arith.constant 0 : index
    %c0_2 = arith.constant 0 : index
    %1 = vector.load %arg2[%c0_1, %c0_2] : memref<32x512xf32, #tpu.memory_space<vmem>>, vector<32x512xf32>
    %cst = arith.constant dense<0.000000e+00> : vector<3x512xf32>
    %2 = tpu.matmul %0, %1, %cst {dimension_numbers = #tpu.dot_dimension_numbers<[1], [0], [0], [1], [0, 0, 1, 1], [], []>} : vector<3x32xf32>, vector<32x512xf32>, vector<3x512xf32> -> vector<3x512xf32>
    %c0_3 = arith.constant 0 : index
    %c0_4 = arith.constant 0 : index
    %3 = vector.load %arg1[%c0_3, %c0_4] : memref<3x1xf32, #tpu.memory_space<vmem>>, vector<3x1xf32>
    %4 = vector.broadcast %3 : vector<3x1xf32> to vector<3x512xf32>
    %5 = arith.addf %2, %4 : vector<3x512xf32>
    %c0_5 = arith.constant 0 : index
    %c0_6 = arith.constant 0 : index
    %6 = vector.load %arg3[%c0_5, %c0_6] : memref<3x512xf32, #tpu.memory_space<vmem>>, vector<3x512xf32>
    tpu.vector_store %arg3[%c0_5, %c0_6], %5 {strides = array<i32>} : memref<3x512xf32, #tpu.memory_space<vmem>>, vector<3x512xf32>,
    return
  }
}

</mosaic_0001>

<llo_original>
// kernel: tpu_custom_call.1
$region0: #{tpu_custom_call.1}
  #allocation0 [shape = 'u32[]', space=smem, size = 0x4, offset = 0x4, fixed_abs, tag = 'smem constant byte address 0x4 - core index']
  #allocation1 [shape = 'u32[144,128]{1,0:T(1,128)}', space=vmem, size = 0x12000, scoped, tag = 'internal scratch']
  %s0 = inlined_call_operand.vmem [shape: f32[3,32], index: 0, kind: input, shape index: {}]
  %s1 = inlined_call_operand.vmem [shape: f32[3,1], index: 1, kind: input, shape index: {}]
  %s2 = inlined_call_operand.hbm [shape: f32[32,512], index: 2, kind: input, shape index: {}]
  %s3 = inlined_call_operand.hbm [shape: f32[3,512], index: 3, kind: output, shape index: {}]
  %s4 = sld [smem:[#allocation0]]
  $region26: #{tpu_custom_call.1} parent=0
    _
  %s6 = ssub.s32 1, %s4
  %s7 = scalar_select 0, %s6, %s4
  $region1: #{tpu_custom_call.1} parent=0
    #allocation2 [shape = 'u8[65536]{0}', space=vmem, size = 0x10000, scoped, tag = 'input window, operand 2, single buffered']
    #allocation3 [shape = 's32[1]{0}', space=sflag, size = 0x4, scoped, tag = 'scoped memory for tpu_custom_call.1']
    #allocation4 [shape = 's32[1]{0}', space=sflag, size = 0x4, scoped, tag = 'scoped memory for tpu_custom_call.1']
    #allocation5 [shape = 'u8[8192]{0}', space=vmem, size = 0x2000, scoped, tag = 'output window, operand 0, single buffered']
    %8 = vsyncpa [#allocation3], 0
    %9 = vsyncpa [#allocation4], 0
    // Predicated region
    $region2: #{tpu_custom_call.1} parent=1 // pred_check
      _
    $region3: #{tpu_custom_call.1} parent=1 // pred_check_branch
      %11 = sbr.rel (0) target = $region5
    $region4: #{tpu_custom_call.1} parent=1 // pred_region
      _
    $region5: #{tpu_custom_call.1} parent=1 // pred_fallthru
      _
    // Predicated region
    $region6: #{tpu_custom_call.1} parent=1 // pred_check
      _
    $region7: #{tpu_custom_call.1} parent=1 // pred_check_branch
      %13 = sbr.rel (0) target = $region9
    $region8: #{tpu_custom_call.1} parent=1 // pred_region
      _
    $region9: #{tpu_custom_call.1} parent=1 // pred_fallthru
      _
    // Predicated region
    $region10: #{tpu_custom_call.1} parent=1 // pred_check
      _
    $region11: #{tpu_custom_call.1} parent=1 // pred_check_branch
      %15 = sbr.rel (0) target = $region13
    $region12: #{tpu_custom_call.1} parent=1 // pred_region
      %s17 = ssub.s32 2048, 2048
      %18 = vsyncadd [#allocation3], %s17
      %s19 = sshll.u32 [#allocation2], 4
      %s20 = int_to_ptr.vmem [resolvable:$true] %s19
      %25 = dma.hbm_to_vmem [thread:$0]  %s2, 2048, %s20, [#allocation3], 512, 512, 32
    $region13: #{tpu_custom_call.1} parent=1 // pred_fallthru
      _
    // Predicated region
    $region14: #{tpu_custom_call.1} parent=1 // pred_check
      _
    $region15: #{tpu_custom_call.1} parent=1 // pred_check_branch
      %27 = sbr.rel (0) target = $region17
    $region16: #{tpu_custom_call.1} parent=1 // pred_region
      %28 = dma.done [#allocation3], 2048
    $region17: #{tpu_custom_call.1} parent=1 // pred_fallthru
      _
    %v29 = vld [vmem:[%s0] sm:$0x7]
    %v30 = vld [vmem:[#allocation2] sm:$0xff]
    %v31 = vld [vmem:[#allocation2 + $0x8] sm:$0xff]
    %v32 = vld [vmem:[#allocation2 + $0x10] sm:$0xff]
    %v33 = vld [vmem:[#allocation2 + $0x18] sm:$0xff]
    %v34 = vld [vmem:[#allocation2 + $0x20] sm:$0xff]
    %v35 = vld [vmem:[#allocation2 + $0x28] sm:$0xff]
    %v36 = vld [vmem:[#allocation2 + $0x30] sm:$0xff]
    %v37 = vld [vmem:[#allocation2 + $0x38] sm:$0xff]
    %v38 = vld [vmem:[#allocation2 + $0x40] sm:$0xff]
    %v39 = vld [vmem:[#allocation2 + $0x48] sm:$0xff]
    %v40 = vld [vmem:[#allocation2 + $0x50] sm:$0xff]
    %v41 = vld [vmem:[#allocation2 + $0x58] sm:$0xff]
    %v42 = vld [vmem:[#allocation2 + $0x60] sm:$0xff]
    %v43 = vld [vmem:[#allocation2 + $0x68] sm:$0xff]
    %v44 = vld [vmem:[#allocation2 + $0x70] sm:$0xff]
    %v45 = vld [vmem:[#allocation2 + $0x78] sm:$0xff]
    %v46 = vld [vmem:[%s1] sm:$0x7]
    %48 = vset.pattern.permute.xlu0 0
    %49 = vperm.xlu0 %48, %v46
    %v50 = vpop.permute.xlu0 %49
    %vm52 = vcmask 261120
    %v54 = vsel %vm52, %v29, 0
    %56 = vmatprep.subr.mxu0 0.0
    %57 = vmatpush1.msra.mxu0 0.0
    %58 = vmatprep.subr.mxu0 0.0
    %59 = vmatpush1.msra.mxu0 0.0
    %60 = vmatprep.subr.mxu0 0.0
    %61 = vmatpush1.msra.mxu0 0.0
    %62 = vmatprep.subr.mxu0 0.0
    %63 = vmatpush1.msra.mxu0 0.0
    %64 = vmatprep.subr.mxu0 0.0
    %65 = vmatpush1.msra.mxu0 0.0
    %66 = vmatprep.subr.mxu0 0.0
    %67 = vmatpush1.msra.mxu0 0.0
    %68 = vmatprep.subr.mxu0 0.0
    %69 = vmatpush1.msra.mxu0 0.0
    %70 = vmatprep.subr.mxu0 0.0
    %71 = vmatpush1.msra.mxu0 0.0
    %72 = vmatprep.subr.mxu0 0.0
    %73 = vmatpush1.msra.mxu0 0.0
    %74 = vmatprep.subr.mxu0 0.0
    %75 = vmatpush1.msra.mxu0 0.0
    %76 = vmatprep.subr.mxu0 0.0
    %77 = vmatpush1.msra.mxu0 0.0
    %78 = vmatprep.subr.mxu0 0.0
    %79 = vmatpush1.msra.mxu0 0.0
    %80 = vmatprep.subr.mxu0 %v43
    %81 = vmatpush1.msra.mxu0 %v42
    %82 = vmatprep.subr.mxu0 %v39
    %83 = vmatpush1.msra.mxu0 %v38
    %84 = vmatprep.subr.mxu0 %v35
    %85 = vmatpush1.msra.mxu0 %v34
    %86 = vmatprep.subr.mxu0 %v31
    %87 = vmatpush1.msra.mxu0 %v30
    %88 = vmatprep.subr.mxu0 0.0
    %89 = vmatpush2.msra.mxu0 0.0
    %90 = vmatprep.subr.mxu0 0.0
    %91 = vmatpush2.msra.mxu0 0.0
    %92 = vmatprep.subr.mxu0 0.0
    %93 = vmatpush2.msra.mxu0 0.0
    %94 = vmatprep.subr.mxu0 0.0
    %95 = vmatpush2.msra.mxu0 0.0
    %96 = vmatprep.subr.mxu0 0.0
    %97 = vmatpush2.msra.mxu0 0.0
    %98 = vmatprep.subr.mxu0 0.0
    %99 = vmatpush2.msra.mxu0 0.0
    %100 = vmatprep.subr.mxu0 0.0
    %101 = vmatpush2.msra.mxu0 0.0
    %102 = vmatprep.subr.mxu0 0.0
    %103 = vmatpush2.msra.mxu0 0.0
    %104 = vmatprep.subr.mxu0 0.0
    %105 = vmatpush2.msra.mxu0 0.0
    %106 = vmatprep.subr.mxu0 0.0
    %107 = vmatpush2.msra.mxu0 0.0
    %108 = vmatprep.subr.mxu0 0.0
    %109 = vmatpush2.msra.mxu0 0.0
    %110 = vmatprep.subr.mxu0 0.0
    %111 = vmatpush2.msra.mxu0 0.0
    %112 = vmatprep.subr.mxu0 0.0
    %113 = vmatpush2.msra.mxu0 0.0
    %114 = vmatprep.subr.mxu0 0.0
    %115 = vmatpush2.msra.mxu0 0.0
    %116 = vmatprep.subr.mxu0 0.0
    %117 = vmatpush2.msra.mxu0 0.0
    %118 = vmatprep.subr.mxu0 0.0
    %119 = vmatpush2.msra.mxu0 0.0
    %120 = vmatprep.mubr.f32.mxu0 0.0
    %121 = vmatmul.mubr.f32.gmra.mxu0 %v54
    %v122 = vpop.f32.mrf.mxu0
    %v123 = vadd.f32 %v50, %v122
    %v124 = vpop.f32.mrf.mxu0
    %v125 = vadd.f32 %v50, %v124
    %126 = vdwg.mxu0
    %127 = vmatprep.subr.mxu0 0.0
    %128 = vmatpush1.msra.mxu0 0.0
    %129 = vmatprep.subr.mxu0 0.0
    %130 = vmatpush1.msra.mxu0 0.0
    %131 = vmatprep.subr.mxu0 0.0
    %132 = vmatpush1.msra.mxu0 0.0
    %133 = vmatprep.subr.mxu0 0.0
    %134 = vmatpush1.msra.mxu0 0.0
    %135 = vmatprep.subr.mxu0 0.0
    %136 = vmatpush1.msra.mxu0 0.0
    %137 = vmatprep.subr.mxu0 0.0
    %138 = vmatpush1.msra.mxu0 0.0
    %139 = vmatprep.subr.mxu0 0.0
    %140 = vmatpush1.msra.mxu0 0.0
    %141 = vmatprep.subr.mxu0 0.0
    %142 = vmatpush1.msra.mxu0 0.0
    %143 = vmatprep.subr.mxu0 0.0
    %144 = vmatpush1.msra.mxu0 0.0
    %145 = vmatprep.subr.mxu0 0.0
    %146 = vmatpush1.msra.mxu0 0.0
    %147 = vmatprep.subr.mxu0 0.0
    %148 = vmatpush1.msra.mxu0 0.0
    %149 = vmatprep.subr.mxu0 0.0
    %150 = vmatpush1.msra.mxu0 0.0
    %151 = vmatprep.subr.mxu0 %v45
    %152 = vmatpush1.msra.mxu0 %v44
    %153 = vmatprep.subr.mxu0 %v41
    %154 = vmatpush1.msra.mxu0 %v40
    %155 = vmatprep.subr.mxu0 %v37
    %156 = vmatpush1.msra.mxu0 %v36
    %157 = vmatprep.subr.mxu0 %v33
    %158 = vmatpush1.msra.mxu0 %v32
    %159 = vmatprep.subr.mxu0 0.0
    %160 = vmatpush2.msra.mxu0 0.0
    %161 = vmatprep.subr.mxu0 0.0
    %162 = vmatpush2.msra.mxu0 0.0
    %163 = vmatprep.subr.mxu0 0.0
    %164 = vmatpush2.msra.mxu0 0.0
    %165 = vmatprep.subr.mxu0 0.0
    %166 = vmatpush2.msra.mxu0 0.0
    %167 = vmatprep.subr.mxu0 0.0
    %168 = vmatpush2.msra.mxu0 0.0
    %169 = vmatprep.subr.mxu0 0.0
    %170 = vmatpush2.msra.mxu0 0.0
    %171 = vmatprep.subr.mxu0 0.0
    %172 = vmatpush2.msra.mxu0 0.0
    %173 = vmatprep.subr.mxu0 0.0
    %174 = vmatpush2.msra.mxu0 0.0
    %175 = vmatprep.subr.mxu0 0.0
    %176 = vmatpush2.msra.mxu0 0.0
    %177 = vmatprep.subr.mxu0 0.0
    %178 = vmatpush2.msra.mxu0 0.0
    %179 = vmatprep.subr.mxu0 0.0
    %180 = vmatpush2.msra.mxu0 0.0
    %181 = vmatprep.subr.mxu0 0.0
    %182 = vmatpush2.msra.mxu0 0.0
    %183 = vmatprep.subr.mxu0 0.0
    %184 = vmatpush2.msra.mxu0 0.0
    %185 = vmatprep.subr.mxu0 0.0
    %186 = vmatpush2.msra.mxu0 0.0
    %187 = vmatprep.subr.mxu0 0.0
    %188 = vmatpush2.msra.mxu0 0.0
    %189 = vmatprep.subr.mxu0 0.0
    %190 = vmatpush2.msra.mxu0 0.0
    %191 = vmatprep.mubr.f32.mxu0 0.0
    %192 = vmatmul.mubr.f32.gmra.mxu0 %v54
    %v193 = vpop.f32.mrf.mxu0
    %v194 = vadd.f32 %v50, %v193
    %v195 = vpop.f32.mrf.mxu0
    %v196 = vadd.f32 %v50, %v195
    %197 = vdwg.mxu0
    %v202 = vcombine.low %v123, %v125
    %v203 = vcombine.low %v194, %v196
    %206 = vst [vmem:[#allocation5] sm:$0x77] %v202
    %207 = vst [vmem:[#allocation5 + $0x8] sm:$0x77] %v203
    // Predicated region
    $region18: #{tpu_custom_call.1} parent=1 // pred_check
      _
    $region19: #{tpu_custom_call.1} parent=1 // pred_check_branch
      %209 = sbr.rel (0) target = $region21
    $region20: #{tpu_custom_call.1} parent=1 // pred_region
      %s211 = ssub.s32 256, 256
      %212 = vsyncadd [#allocation4], %s211
      %s214 = sshll.u32 [#allocation5], 4
      %s215 = int_to_ptr.vmem [resolvable:$true] %s214
      %217 = dma.vmem_to_hbm [thread:$0]  %s215, 256, %s3, [#allocation4]
    $region21: #{tpu_custom_call.1} parent=1 // pred_fallthru
      _
    // Predicated region
    $region22: #{tpu_custom_call.1} parent=1 // pred_check
      _
    $region23: #{tpu_custom_call.1} parent=1 // pred_check_branch
      %219 = sbr.rel (0) target = $region25
    $region24: #{tpu_custom_call.1} parent=1 // pred_region
      %220 = dma.done [#allocation4], 256
    $region25: #{tpu_custom_call.1} parent=1 // pred_fallthru
      _
    %221 = vsyncpa [#allocation3], 1
    %222 = vsyncpa [#allocation4], 1

</llo_original>
